<compile_context>
chip_gen: v7x
topology: tpu7x:2x2x1
jax: 0.10.0
libtpu: 0.0.40
codegen_flags: <defaults>
</compile_context>

<pallas_src>
import functools

import jax
import jax.numpy as jnp
from jax import lax
from jax.experimental import pallas as pl
from jax.experimental.pallas import tpu as pltpu


def _band_matmul_kernel(z_ref, w_ref, o_ref, *, mode_block):
    """One (mode_block, batch_block) tile of the retained-band update.

    z_ref : (mode_block, nb, 2H)   lane-dense [zr | zi] rows
    w_ref : (mode_block, 2H, 2H)   per-mode real matrices (pre-transposed)
    o_ref : (mode_block, nb, 2H)   lane-dense [out_r | out_i] rows
    """
    out_dtype = o_ref.dtype

    def body(m, carry):
        out = jnp.dot(z_ref[m], w_ref[m], preferred_element_type=jnp.float32)
        o_ref[m] = out.astype(out_dtype)
        return carry

    # mode_block is small & static; fori_loop(unroll=True) keeps live ranges
    # bounded while giving the scheduler straight-line code.
    lax.fori_loop(0, mode_block, body, 0, unroll=True)


def _pad_to(x, axis, size):
    pad = size - x.shape[axis]
    if pad == 0:
        return x
    widths = [(0, 0)] * x.ndim
    widths[axis] = (0, pad)
    return jnp.pad(x, widths)


@functools.partial(
    jax.jit,
    static_argnames=("modes1", "batch_block", "mode_block", "compute_dtype"))
def controlled_ode_forward(t, v, A, *, modes1, batch_block=128, mode_block=8,
                           compute_dtype=None):
    """Pallas implementation of ControlledODE.forward (1D / flag1d case).

    t : unused scalar (signature parity with the PyTorch module)
    v : (B, 2, dim_x, H)
    A : (2, modes1, H, H)
    batch_block : rows per MXU pass (128 for v5e; 256 on v6e/v7x if VMEM allows)
    mode_block  : modes of Wt resident per grid step (bounds VMEM on v7x)
    compute_dtype : optional MXU operand dtype (e.g. jnp.bfloat16), cast once
        at the HBM boundary; accumulation stays f32; output keeps v.dtype.
    Returns Av with the same shape / dtype as v.
    """
    del t  # unused, exactly as in the PyTorch forward
    B, two, dim_x, H = v.shape
    if two != 2:
        raise ValueError("v must have shape (batch, 2, dim_x, hidden)")
    if modes1 % 2 != 0 or modes1 > dim_x:
        # Odd modes1 is ill-defined in the reference module (band has
        # 2*(modes1//2) rows but A has modes1 matrices): reject explicitly.
        raise ValueError("modes1 must be even and <= dim_x")
    M = modes1
    H2 = 2 * H
    f0 = dim_x // 2 - M // 2
    f1 = f0 + M

    # ---- boundary relayout: retained band only, mode-major, lane-dense -----
    # z_band[m, b, :H] = Re v[b, :, f0+m, :],  z_band[m, b, H:] = Im.
    z_band = jnp.transpose(v[:, :, f0:f1, :], (2, 0, 1, 3)).reshape(M, B, H2)

    # ---- hoist W assembly out of the kernel (built once per call) ----------
    # out = z @ Wt[m]  with  Wt[m] = [[A0^T, A1^T], [-A1^T, A0^T]].
    A0t = jnp.swapaxes(A[0], -1, -2)                       # (M, H, H)
    A1t = jnp.swapaxes(A[1], -1, -2)                       # (M, H, H)
    Wt = jnp.concatenate(
        [jnp.concatenate([A0t, A1t], axis=-1),             # (M, H, 2H)
         jnp.concatenate([-A1t, A0t], axis=-1)],           # (M, H, 2H)
        axis=-2)                                           # (M, 2H, 2H)

    if compute_dtype is not None:
        # Boundary cast: halves kernel-input DMA bytes and MXU operand width.
        z_band = z_band.astype(compute_dtype)
        Wt = Wt.astype(compute_dtype)

    # ---- tiling -------------------------------------------------------------
    nb = min(B, batch_block)
    num_bb = -(-B // nb)
    Bp = num_bb * nb
    mm = min(M, mode_block)
    num_mb = -(-M // mm)
    Mp = num_mb * mm

    # Zero-pad to whole blocks (padded rows produce zeros and are sliced away).
    z_band = _pad_to(_pad_to(z_band, 0, Mp), 1, Bp)        # (Mp, Bp, 2H)
    Wt = _pad_to(Wt, 0, Mp)                                # (Mp, 2H, 2H)

    kernel = functools.partial(_band_matmul_kernel, mode_block=mm)

    out_band = pl.pallas_call(
        kernel,
        out_shape=jax.ShapeDtypeStruct((Mp, Bp, H2), v.dtype),
        # Mode axis OUTER so the Wt block index is constant across the inner
        # batch-block axis -> Pallas keeps it resident (no re-fetch per batch
        # step).  Every grid point writes a disjoint output block, so both
        # axes are "parallel" (megacore split on v7x even when num_bb == 1).
        grid=(num_mb, num_bb),
        in_specs=[
            pl.BlockSpec((mm, nb, H2), lambda mb, bb: (mb, bb, 0)),
            pl.BlockSpec((mm, H2, H2), lambda mb, bb: (mb, 0, 0)),
        ],
        out_specs=pl.BlockSpec((mm, nb, H2), lambda mb, bb: (mb, bb, 0)),
        compiler_params=pltpu.CompilerParams(
            dimension_semantics=("parallel", "parallel"),
            # Raise the default scoped VMEM limit (16/32 MiB) so large batch /
            # mode blocks are accepted; 64 MiB stays within v7x physical VMEM.
            vmem_limit_bytes=64 * 1024 * 1024),
    )(z_band, Wt)

    # ---- embed the band back into the module's full output -----------------
    # The full-size zero write is inherent to the module contract; it is a
    # single fused XLA zeros+set, while the Pallas kernel only touched band
    # bytes.
    band = out_band[:M, :B].reshape(M, B, 2, H)
    band = jnp.transpose(band, (1, 2, 0, 3))               # (B, 2, M, H)
    Av = jnp.zeros(v.shape, v.dtype).at[:, :, f0:f1, :].set(band)
    return Av


def _reference_forward(t, v, A, modes1):
    """Plain-JAX reference matching the PyTorch forward (1D)."""
    del t
    dim_x = v.shape[2]
    f0 = dim_x // 2 - modes1 // 2
    f1 = dim_x // 2 + modes1 // 2
    z = v[:, :, f0:f1, :]
    op = lambda Ak, zk: jnp.einsum('xij,bxj->bxi', Ak, zk)
    real = op(A[0], z[:, 0]) - op(A[1], z[:, 1])
    imag = op(A[1], z[:, 0]) + op(A[0], z[:, 1])
    band = jnp.stack([real, imag], axis=1)
    Av = jnp.zeros_like(v)
    return Av.at[:, :, f0:f1, :].set(band)


if __name__ == "__main__":
    # Small shapes consistent with the module's forward.
    batch = 2
    hidden_channels = 32
    dim_x = 16
    modes1 = 8

    key = jax.random.PRNGKey(0)
    k_A, k_v = jax.random.split(key)

    # Deterministic parameter init mirroring:  A = scale * rand(2, modes1, H, H)
    scale = 1.0 / hidden_channels ** 2
    A = scale * jax.random.uniform(
        k_A, (2, modes1, hidden_channels, hidden_channels), dtype=jnp.float32)
    # Input v: (batch, 2, dim_x, hidden)
    v = jax.random.normal(
        k_v, (batch, 2, dim_x, hidden_channels), dtype=jnp.float32)
    t = jnp.float32(0.0)

    Av = controlled_ode_forward(t, v, A, modes1=modes1)
    Av = jax.block_until_ready(Av)

    Av_ref = _reference_forward(t, v, A, modes1)
    assert Av.shape == v.shape and Av.dtype == v.dtype
    err = float(jnp.max(jnp.abs(Av - Av_ref)))
    assert jnp.allclose(Av, Av_ref, atol=1e-4, rtol=1e-4), err

    # TODO(synk): `prod()` relies on torch.fft.{ifftn,fftn,fftshift} plus the
    # external spde_func callback; FFT has no Pallas primitive, so only
    # forward() is implemented here.
    print("KERNEL_OK")
</pallas_src>

<mosaic_0001>
module attributes {stable_mosaic.version = 11 : i64} {
  func.func @_band_matmul_kernel(%arg0: i32, %arg1: i32, %arg2: memref<8x2x64xf32, #tpu.memory_space<vmem>>, %arg3: memref<8x64x64xf32, #tpu.memory_space<vmem>>, %arg4: memref<8x2x64xf32, #tpu.memory_space<vmem>>) attributes {dimension_semantics = [#tpu.dimension_semantics<parallel>, #tpu.dimension_semantics<parallel>], iteration_bounds = array<i64: 1, 1>, scalar_prefetch = 0 : i64, scratch_operands = 0 : i64, tpu.core_type = #tpu.core_type<tc>, window_params = [{transform_indices = @transform_0, window_bounds = array<i64: 8, 2, 64>}, {transform_indices = @transform_1, window_bounds = array<i64: 8, 64, 64>}, {transform_indices = @transform_2, window_bounds = array<i64: 8, 2, 64>}]} {
    %c0_i32 = arith.constant 0 : i32
    %0 = arith.index_cast %c0_i32 : i32 to index
    %c0 = arith.constant 0 : index
    %c0_0 = arith.constant 0 : index
    %1 = vector.load %arg2[%0, %c0, %c0_0] : memref<8x2x64xf32, #tpu.memory_space<vmem>>, vector<1x2x64xf32>
    %2 = vector.shape_cast %1 : vector<1x2x64xf32> to vector<2x64xf32>
    %3 = arith.index_cast %c0_i32 : i32 to index
    %c0_1 = arith.constant 0 : index
    %c0_2 = arith.constant 0 : index
    %4 = vector.load %arg3[%3, %c0_1, %c0_2] : memref<8x64x64xf32, #tpu.memory_space<vmem>>, vector<1x64x64xf32>
    %5 = vector.shape_cast %4 : vector<1x64x64xf32> to vector<64x64xf32>
    %cst = arith.constant dense<0.000000e+00> : vector<2x64xf32>
    %6 = tpu.matmul %2, %5, %cst {dimension_numbers = #tpu.dot_dimension_numbers<[1], [0], [0], [1], [0, 0, 1, 1], [], []>} : vector<2x64xf32>, vector<64x64xf32>, vector<2x64xf32> -> vector<2x64xf32>
    %7 = arith.index_cast %c0_i32 : i32 to index
    %c0_3 = arith.constant 0 : index
    %c0_4 = arith.constant 0 : index
    %8 = vector.load %arg4[%7, %c0_3, %c0_4] : memref<8x2x64xf32, #tpu.memory_space<vmem>>, vector<1x2x64xf32>
    %9 = vector.shape_cast %8 : vector<1x2x64xf32> to vector<2x64xf32>
    %10 = vector.shape_cast %6 : vector<2x64xf32> to vector<1x2x64xf32>
    tpu.vector_store %arg4[%7, %c0_3, %c0_4], %10 {strides = array<i32>} : memref<8x2x64xf32, #tpu.memory_space<vmem>>, vector<1x2x64xf32>,
    %c1_i32 = arith.constant 1 : i32
    %11 = arith.index_cast %c1_i32 : i32 to index
    %c0_5 = arith.constant 0 : index
    %c0_6 = arith.constant 0 : index
    %12 = vector.load %arg2[%11, %c0_5, %c0_6] : memref<8x2x64xf32, #tpu.memory_space<vmem>>, vector<1x2x64xf32>
    %13 = vector.shape_cast %12 : vector<1x2x64xf32> to vector<2x64xf32>
    %14 = arith.index_cast %c1_i32 : i32 to index
    %c0_7 = arith.constant 0 : index
    %c0_8 = arith.constant 0 : index
    %15 = vector.load %arg3[%14, %c0_7, %c0_8] : memref<8x64x64xf32, #tpu.memory_space<vmem>>, vector<1x64x64xf32>
    %16 = vector.shape_cast %15 : vector<1x64x64xf32> to vector<64x64xf32>
    %cst_9 = arith.constant dense<0.000000e+00> : vector<2x64xf32>
    %17 = tpu.matmul %13, %16, %cst_9 {dimension_numbers = #tpu.dot_dimension_numbers<[1], [0], [0], [1], [0, 0, 1, 1], [], []>} : vector<2x64xf32>, vector<64x64xf32>, vector<2x64xf32> -> vector<2x64xf32>
    %18 = arith.index_cast %c1_i32 : i32 to index
    %c0_10 = arith.constant 0 : index
    %c0_11 = arith.constant 0 : index
    %19 = vector.load %arg4[%18, %c0_10, %c0_11] : memref<8x2x64xf32, #tpu.memory_space<vmem>>, vector<1x2x64xf32>
    %20 = vector.shape_cast %19 : vector<1x2x64xf32> to vector<2x64xf32>
    %21 = vector.shape_cast %17 : vector<2x64xf32> to vector<1x2x64xf32>
    tpu.vector_store %arg4[%18, %c0_10, %c0_11], %21 {strides = array<i32>} : memref<8x2x64xf32, #tpu.memory_space<vmem>>, vector<1x2x64xf32>,
    %c2_i32 = arith.constant 2 : i32
    %22 = arith.index_cast %c2_i32 : i32 to index
    %c0_12 = arith.constant 0 : index
    %c0_13 = arith.constant 0 : index
    %23 = vector.load %arg2[%22, %c0_12, %c0_13] : memref<8x2x64xf32, #tpu.memory_space<vmem>>, vector<1x2x64xf32>
    %24 = vector.shape_cast %23 : vector<1x2x64xf32> to vector<2x64xf32>
    %25 = arith.index_cast %c2_i32 : i32 to index
    %c0_14 = arith.constant 0 : index
    %c0_15 = arith.constant 0 : index
    %26 = vector.load %arg3[%25, %c0_14, %c0_15] : memref<8x64x64xf32, #tpu.memory_space<vmem>>, vector<1x64x64xf32>
    %27 = vector.shape_cast %26 : vector<1x64x64xf32> to vector<64x64xf32>
    %cst_16 = arith.constant dense<0.000000e+00> : vector<2x64xf32>
    %28 = tpu.matmul %24, %27, %cst_16 {dimension_numbers = #tpu.dot_dimension_numbers<[1], [0], [0], [1], [0, 0, 1, 1], [], []>} : vector<2x64xf32>, vector<64x64xf32>, vector<2x64xf32> -> vector<2x64xf32>
    %29 = arith.index_cast %c2_i32 : i32 to index
    %c0_17 = arith.constant 0 : index
    %c0_18 = arith.constant 0 : index
    %30 = vector.load %arg4[%29, %c0_17, %c0_18] : memref<8x2x64xf32, #tpu.memory_space<vmem>>, vector<1x2x64xf32>
    %31 = vector.shape_cast %30 : vector<1x2x64xf32> to vector<2x64xf32>
    %32 = vector.shape_cast %28 : vector<2x64xf32> to vector<1x2x64xf32>
    tpu.vector_store %arg4[%29, %c0_17, %c0_18], %32 {strides = array<i32>} : memref<8x2x64xf32, #tpu.memory_space<vmem>>, vector<1x2x64xf32>,
    %c3_i32 = arith.constant 3 : i32
    %33 = arith.index_cast %c3_i32 : i32 to index
    %c0_19 = arith.constant 0 : index
    %c0_20 = arith.constant 0 : index
    %34 = vector.load %arg2[%33, %c0_19, %c0_20] : memref<8x2x64xf32, #tpu.memory_space<vmem>>, vector<1x2x64xf32>
    %35 = vector.shape_cast %34 : vector<1x2x64xf32> to vector<2x64xf32>
    %36 = arith.index_cast %c3_i32 : i32 to index
    %c0_21 = arith.constant 0 : index
    %c0_22 = arith.constant 0 : index
    %37 = vector.load %arg3[%36, %c0_21, %c0_22] : memref<8x64x64xf32, #tpu.memory_space<vmem>>, vector<1x64x64xf32>
    %38 = vector.shape_cast %37 : vector<1x64x64xf32> to vector<64x64xf32>
    %cst_23 = arith.constant dense<0.000000e+00> : vector<2x64xf32>
    %39 = tpu.matmul %35, %38, %cst_23 {dimension_numbers = #tpu.dot_dimension_numbers<[1], [0], [0], [1], [0, 0, 1, 1], [], []>} : vector<2x64xf32>, vector<64x64xf32>, vector<2x64xf32> -> vector<2x64xf32>
    %40 = arith.index_cast %c3_i32 : i32 to index
    %c0_24 = arith.constant 0 : index
    %c0_25 = arith.constant 0 : index
    %41 = vector.load %arg4[%40, %c0_24, %c0_25] : memref<8x2x64xf32, #tpu.memory_space<vmem>>, vector<1x2x64xf32>
    %42 = vector.shape_cast %41 : vector<1x2x64xf32> to vector<2x64xf32>
    %43 = vector.shape_cast %39 : vector<2x64xf32> to vector<1x2x64xf32>
    tpu.vector_store %arg4[%40, %c0_24, %c0_25], %43 {strides = array<i32>} : memref<8x2x64xf32, #tpu.memory_space<vmem>>, vector<1x2x64xf32>,
    %c4_i32 = arith.constant 4 : i32
    %44 = arith.index_cast %c4_i32 : i32 to index
    %c0_26 = arith.constant 0 : index
    %c0_27 = arith.constant 0 : index
    %45 = vector.load %arg2[%44, %c0_26, %c0_27] : memref<8x2x64xf32, #tpu.memory_space<vmem>>, vector<1x2x64xf32>
    %46 = vector.shape_cast %45 : vector<1x2x64xf32> to vector<2x64xf32>
    %47 = arith.index_cast %c4_i32 : i32 to index
    %c0_28 = arith.constant 0 : index
    %c0_29 = arith.constant 0 : index
    %48 = vector.load %arg3[%47, %c0_28, %c0_29] : memref<8x64x64xf32, #tpu.memory_space<vmem>>, vector<1x64x64xf32>
    %49 = vector.shape_cast %48 : vector<1x64x64xf32> to vector<64x64xf32>
    %cst_30 = arith.constant dense<0.000000e+00> : vector<2x64xf32>
    %50 = tpu.matmul %46, %49, %cst_30 {dimension_numbers = #tpu.dot_dimension_numbers<[1], [0], [0], [1], [0, 0, 1, 1], [], []>} : vector<2x64xf32>, vector<64x64xf32>, vector<2x64xf32> -> vector<2x64xf32>
    %51 = arith.index_cast %c4_i32 : i32 to index
    %c0_31 = arith.constant 0 : index
    %c0_32 = arith.constant 0 : index
    %52 = vector.load %arg4[%51, %c0_31, %c0_32] : memref<8x2x64xf32, #tpu.memory_space<vmem>>, vector<1x2x64xf32>
    %53 = vector.shape_cast %52 : vector<1x2x64xf32> to vector<2x64xf32>
    %54 = vector.shape_cast %50 : vector<2x64xf32> to vector<1x2x64xf32>
    tpu.vector_store %arg4[%51, %c0_31, %c0_32], %54 {strides = array<i32>} : memref<8x2x64xf32, #tpu.memory_space<vmem>>, vector<1x2x64xf32>,
    %c5_i32 = arith.constant 5 : i32
    %55 = arith.index_cast %c5_i32 : i32 to index
    %c0_33 = arith.constant 0 : index
    %c0_34 = arith.constant 0 : index
    %56 = vector.load %arg2[%55, %c0_33, %c0_34] : memref<8x2x64xf32, #tpu.memory_space<vmem>>, vector<1x2x64xf32>
    %57 = vector.shape_cast %56 : vector<1x2x64xf32> to vector<2x64xf32>
    %58 = arith.index_cast %c5_i32 : i32 to index
    %c0_35 = arith.constant 0 : index
    %c0_36 = arith.constant 0 : index
    %59 = vector.load %arg3[%58, %c0_35, %c0_36] : memref<8x64x64xf32, #tpu.memory_space<vmem>>, vector<1x64x64xf32>
    %60 = vector.shape_cast %59 : vector<1x64x64xf32> to vector<64x64xf32>
    %cst_37 = arith.constant dense<0.000000e+00> : vector<2x64xf32>
    %61 = tpu.matmul %57, %60, %cst_37 {dimension_numbers = #tpu.dot_dimension_numbers<[1], [0], [0], [1], [0, 0, 1, 1], [], []>} : vector<2x64xf32>, vector<64x64xf32>, vector<2x64xf32> -> vector<2x64xf32>
    %62 = arith.index_cast %c5_i32 : i32 to index
    %c0_38 = arith.constant 0 : index
    %c0_39 = arith.constant 0 : index
    %63 = vector.load %arg4[%62, %c0_38, %c0_39] : memref<8x2x64xf32, #tpu.memory_space<vmem>>, vector<1x2x64xf32>
    %64 = vector.shape_cast %63 : vector<1x2x64xf32> to vector<2x64xf32>
    %65 = vector.shape_cast %61 : vector<2x64xf32> to vector<1x2x64xf32>
    tpu.vector_store %arg4[%62, %c0_38, %c0_39], %65 {strides = array<i32>} : memref<8x2x64xf32, #tpu.memory_space<vmem>>, vector<1x2x64xf32>,
    %c6_i32 = arith.constant 6 : i32
    %66 = arith.index_cast %c6_i32 : i32 to index
    %c0_40 = arith.constant 0 : index
    %c0_41 = arith.constant 0 : index
    %67 = vector.load %arg2[%66, %c0_40, %c0_41] : memref<8x2x64xf32, #tpu.memory_space<vmem>>, vector<1x2x64xf32>
    %68 = vector.shape_cast %67 : vector<1x2x64xf32> to vector<2x64xf32>
    %69 = arith.index_cast %c6_i32 : i32 to index
    %c0_42 = arith.constant 0 : index
    %c0_43 = arith.constant 0 : index
    %70 = vector.load %arg3[%69, %c0_42, %c0_43] : memref<8x64x64xf32, #tpu.memory_space<vmem>>, vector<1x64x64xf32>
    %71 = vector.shape_cast %70 : vector<1x64x64xf32> to vector<64x64xf32>
    %cst_44 = arith.constant dense<0.000000e+00> : vector<2x64xf32>
    %72 = tpu.matmul %68, %71, %cst_44 {dimension_numbers = #tpu.dot_dimension_numbers<[1], [0], [0], [1], [0, 0, 1, 1], [], []>} : vector<2x64xf32>, vector<64x64xf32>, vector<2x64xf32> -> vector<2x64xf32>
    %73 = arith.index_cast %c6_i32 : i32 to index
    %c0_45 = arith.constant 0 : index
    %c0_46 = arith.constant 0 : index
    %74 = vector.load %arg4[%73, %c0_45, %c0_46] : memref<8x2x64xf32, #tpu.memory_space<vmem>>, vector<1x2x64xf32>
    %75 = vector.shape_cast %74 : vector<1x2x64xf32> to vector<2x64xf32>
    %76 = vector.shape_cast %72 : vector<2x64xf32> to vector<1x2x64xf32>
    tpu.vector_store %arg4[%73, %c0_45, %c0_46], %76 {strides = array<i32>} : memref<8x2x64xf32, #tpu.memory_space<vmem>>, vector<1x2x64xf32>,
    %c7_i32 = arith.constant 7 : i32
    %77 = arith.index_cast %c7_i32 : i32 to index
    %c0_47 = arith.constant 0 : index
    %c0_48 = arith.constant 0 : index
    %78 = vector.load %arg2[%77, %c0_47, %c0_48] : memref<8x2x64xf32, #tpu.memory_space<vmem>>, vector<1x2x64xf32>
    %79 = vector.shape_cast %78 : vector<1x2x64xf32> to vector<2x64xf32>
    %80 = arith.index_cast %c7_i32 : i32 to index
    %c0_49 = arith.constant 0 : index
    %c0_50 = arith.constant 0 : index
    %81 = vector.load %arg3[%80, %c0_49, %c0_50] : memref<8x64x64xf32, #tpu.memory_space<vmem>>, vector<1x64x64xf32>
    %82 = vector.shape_cast %81 : vector<1x64x64xf32> to vector<64x64xf32>
    %cst_51 = arith.constant dense<0.000000e+00> : vector<2x64xf32>
    %83 = tpu.matmul %79, %82, %cst_51 {dimension_numbers = #tpu.dot_dimension_numbers<[1], [0], [0], [1], [0, 0, 1, 1], [], []>} : vector<2x64xf32>, vector<64x64xf32>, vector<2x64xf32> -> vector<2x64xf32>
    %84 = arith.index_cast %c7_i32 : i32 to index
    %c0_52 = arith.constant 0 : index
    %c0_53 = arith.constant 0 : index
    %85 = vector.load %arg4[%84, %c0_52, %c0_53] : memref<8x2x64xf32, #tpu.memory_space<vmem>>, vector<1x2x64xf32>
    %86 = vector.shape_cast %85 : vector<1x2x64xf32> to vector<2x64xf32>
    %87 = vector.shape_cast %83 : vector<2x64xf32> to vector<1x2x64xf32>
    tpu.vector_store %arg4[%84, %c0_52, %c0_53], %87 {strides = array<i32>} : memref<8x2x64xf32, #tpu.memory_space<vmem>>, vector<1x2x64xf32>,
    %c8_i32 = arith.constant 8 : i32
    return
  }
  func.func @transform_0(%arg0: i32, %arg1: i32) -> (i32, i32, i32) {
    %c0_i32 = arith.constant 0 : i32
    %c0_i32_0 = arith.constant 0 : i32
    return %arg0, %arg1, %c0_i32 : i32, i32, i32
  }
  func.func @transform_1(%arg0: i32, %arg1: i32) -> (i32, i32, i32) {
    %c0_i32 = arith.constant 0 : i32
    %c0_i32_0 = arith.constant 0 : i32
    %c0_i32_1 = arith.constant 0 : i32
    return %arg0, %c0_i32, %c0_i32_0 : i32, i32, i32
  }
  func.func @transform_2(%arg0: i32, %arg1: i32) -> (i32, i32, i32) {
    %c0_i32 = arith.constant 0 : i32
    %c0_i32_0 = arith.constant 0 : i32
    return %arg0, %arg1, %c0_i32 : i32, i32, i32
  }
}

</mosaic_0001>

<llo_original>
// kernel: controlled_ode_forward.1
$region0: #{controlled_ode_forward.1}
  #allocation0 [shape = 'u32[]', space=smem, size = 0x4, offset = 0x4, fixed_abs, tag = 'smem constant byte address 0x4 - core index']
  #allocation1 [shape = 'u32[144,128]{1,0:T(1,128)}', space=vmem, size = 0x12000, scoped, tag = 'internal scratch']
  %s0 = inlined_call_operand.hbm [shape: f32[8,2,64], index: 0, kind: input, shape index: {}]
  %s1 = inlined_call_operand.hbm [shape: f32[8,64,64], index: 1, kind: input, shape index: {}]
  %s2 = inlined_call_operand.hbm [shape: f32[8,2,64], index: 2, kind: output, shape index: {}]
  %s3 = sld [smem:[#allocation0]]
  $region26: #{controlled_ode_forward.1} parent=0
    _
  %s5 = ssub.s32 1, %s3
  %s6 = scalar_select 0, %s5, %s3
  $region1: #{controlled_ode_forward.1} parent=0
    #allocation2 [shape = 'u8[8192]{0}', space=vmem, size = 0x2000, scoped, tag = 'input window, operand 0, single buffered']
    #allocation3 [shape = 's32[1]{0}', space=sflag, size = 0x4, scoped, tag = 'scoped memory for controlled_ode_forward.1']
    #allocation4 [shape = 's32[1]{0}', space=sflag, size = 0x4, scoped, tag = 'scoped memory for controlled_ode_forward.1']
    #allocation5 [shape = 'u8[262144]{0}', space=vmem, size = 0x40000, scoped, tag = 'input window, operand 1, single buffered']
    #allocation6 [shape = 's32[1]{0}', space=sflag, size = 0x4, scoped, tag = 'scoped memory for controlled_ode_forward.1']
    #allocation7 [shape = 'u8[8192]{0}', space=vmem, size = 0x2000, scoped, tag = 'output window, operand 0, single buffered']
    %7 = vsyncpa [#allocation3], 0
    %8 = vsyncpa [#allocation6], 0
    %9 = vsyncpa [#allocation4], 0
    // Predicated region
    $region2: #{controlled_ode_forward.1} parent=1 // pred_check
      _
    $region3: #{controlled_ode_forward.1} parent=1 // pred_check_branch
      %11 = sbr.rel (0) target = $region5
    $region4: #{controlled_ode_forward.1} parent=1 // pred_region
      %s13 = ssub.s32 256, 256
      %14 = vsyncadd [#allocation3], %s13
      %s15 = sshll.u32 [#allocation2], 4
      %s16 = int_to_ptr.vmem [resolvable:$true] %s15
      %21 = dma.hbm_to_vmem [thread:$0]  %s0, 256, %s16, [#allocation3], 32, 32, 2
    $region5: #{controlled_ode_forward.1} parent=1 // pred_fallthru
      _
    // Predicated region
    $region6: #{controlled_ode_forward.1} parent=1 // pred_check
      _
    $region7: #{controlled_ode_forward.1} parent=1 // pred_check_branch
      %23 = sbr.rel (0) target = $region9
    $region8: #{controlled_ode_forward.1} parent=1 // pred_region
      %s25 = ssub.s32 8192, 8192
      %26 = vsyncadd [#allocation6], %s25
      %s27 = sshll.u32 [#allocation5], 4
      %s28 = int_to_ptr.vmem [resolvable:$true] %s27
      %33 = dma.hbm_to_vmem [thread:$0]  %s1, 8192, %s28, [#allocation6], 128, 128, 8
    $region9: #{controlled_ode_forward.1} parent=1 // pred_fallthru
      _
    // Predicated region
    $region10: #{controlled_ode_forward.1} parent=1 // pred_check
      _
    $region11: #{controlled_ode_forward.1} parent=1 // pred_check_branch
      %35 = sbr.rel (0) target = $region13
    $region12: #{controlled_ode_forward.1} parent=1 // pred_region
      %36 = dma.done [#allocation3], 256
    $region13: #{controlled_ode_forward.1} parent=1 // pred_fallthru
      _
    // Predicated region
    $region14: #{controlled_ode_forward.1} parent=1 // pred_check
      _
    $region15: #{controlled_ode_forward.1} parent=1 // pred_check_branch
      %38 = sbr.rel (0) target = $region17
    $region16: #{controlled_ode_forward.1} parent=1 // pred_region
      %39 = dma.done [#allocation6], 8192
    $region17: #{controlled_ode_forward.1} parent=1 // pred_fallthru
      _
    %v40 = vld [vmem:[#allocation2] sm:$0x3]
    %v41 = vld [vmem:[#allocation5] sm:$0xff]
    %v42 = vld [vmem:[#allocation5 + $0x8] sm:$0xff]
    %v43 = vld [vmem:[#allocation5 + $0x10] sm:$0xff]
    %v44 = vld [vmem:[#allocation5 + $0x18] sm:$0xff]
    %v45 = vld [vmem:[#allocation5 + $0x20] sm:$0xff]
    %v46 = vld [vmem:[#allocation5 + $0x28] sm:$0xff]
    %v47 = vld [vmem:[#allocation5 + $0x30] sm:$0xff]
    %v48 = vld [vmem:[#allocation5 + $0x38] sm:$0xff]
    %vm49 = vcmask 523264
    %v51 = vsel %vm49, %v40, 0
    %53 = vmatprep.subr.mxu0 0.0
    %54 = vmatpush1.msra.mxu0 %v41
    %55 = vmatprep.subr.mxu0 0.0
    %56 = vmatpush1.msra.mxu0 %v42
    %57 = vmatprep.subr.mxu0 0.0
    %58 = vmatpush1.msra.mxu0 %v43
    %59 = vmatprep.subr.mxu0 0.0
    %60 = vmatpush1.msra.mxu0 %v44
    %61 = vmatprep.subr.mxu0 0.0
    %62 = vmatpush1.msra.mxu0 %v45
    %63 = vmatprep.subr.mxu0 0.0
    %64 = vmatpush1.msra.mxu0 %v46
    %65 = vmatprep.subr.mxu0 0.0
    %66 = vmatpush1.msra.mxu0 %v47
    %67 = vmatprep.subr.mxu0 0.0
    %68 = vmatpush1.msra.mxu0 %v48
    %69 = vmatprep.subr.mxu0 0.0
    %70 = vmatpush1.msra.mxu0 0.0
    %71 = vmatprep.subr.mxu0 0.0
    %72 = vmatpush1.msra.mxu0 0.0
    %73 = vmatprep.subr.mxu0 0.0
    %74 = vmatpush1.msra.mxu0 0.0
    %75 = vmatprep.subr.mxu0 0.0
    %76 = vmatpush1.msra.mxu0 0.0
    %77 = vmatprep.subr.mxu0 0.0
    %78 = vmatpush1.msra.mxu0 0.0
    %79 = vmatprep.subr.mxu0 0.0
    %80 = vmatpush1.msra.mxu0 0.0
    %81 = vmatprep.subr.mxu0 0.0
    %82 = vmatpush1.msra.mxu0 0.0
    %83 = vmatprep.subr.mxu0 0.0
    %84 = vmatpush1.msra.mxu0 0.0
    %85 = vmatprep.subr.mxu0 0.0
    %86 = vmatpush1.msra.mxu0 0.0
    %87 = vmatprep.subr.mxu0 0.0
    %88 = vmatpush1.msra.mxu0 0.0
    %89 = vmatprep.subr.mxu0 0.0
    %90 = vmatpush1.msra.mxu0 0.0
    %91 = vmatprep.subr.mxu0 0.0
    %92 = vmatpush1.msra.mxu0 0.0
    %93 = vmatprep.subr.mxu0 0.0
    %94 = vmatpush1.msra.mxu0 0.0
    %95 = vmatprep.subr.mxu0 0.0
    %96 = vmatpush1.msra.mxu0 0.0
    %97 = vmatprep.subr.mxu0 0.0
    %98 = vmatpush1.msra.mxu0 0.0
    %99 = vmatprep.subr.mxu0 0.0
    %100 = vmatpush1.msra.mxu0 0.0
    %101 = vmatprep.subr.mxu0 0.0
    %102 = vmatpush1.msra.mxu0 0.0
    %103 = vmatprep.subr.mxu0 0.0
    %104 = vmatpush1.msra.mxu0 0.0
    %105 = vmatprep.subr.mxu0 0.0
    %106 = vmatpush1.msra.mxu0 0.0
    %107 = vmatprep.subr.mxu0 0.0
    %108 = vmatpush1.msra.mxu0 0.0
    %109 = vmatprep.subr.mxu0 0.0
    %110 = vmatpush1.msra.mxu0 0.0
    %111 = vmatprep.subr.mxu0 0.0
    %112 = vmatpush1.msra.mxu0 0.0
    %113 = vmatprep.subr.mxu0 0.0
    %114 = vmatpush1.msra.mxu0 0.0
    %115 = vmatprep.subr.mxu0 0.0
    %116 = vmatpush1.msra.mxu0 0.0
    %117 = vmatprep.mubr.f32.mxu0 0.0
    %118 = vmatmul.mubr.f32.gmra.mrb[0].mxu0 %v51
    %v119 = vpop.f32.mrb[0].mxu0
    %v120 = vadd.f32 0.0, %v119
    %v121 = vpop.f32.mrb[0].mxu0
    %122 = vdwg.mxu0
    %vm123 = vcmask 517120
    %124 = vst.msk [vmem:[#allocation7] sm:$0x3] %vm123, %v120
    %s125 = scalar_lea.vmem [#allocation2], 2
    %v126 = vld [vmem:[%s125] sm:$0x3]
    %s127 = scalar_lea.vmem [#allocation5], 64
    %v128 = vld [vmem:[%s127] sm:$0xff]
    %v129 = vld [vmem:[%s127 + $0x8] sm:$0xff]
    %v130 = vld [vmem:[%s127 + $0x10] sm:$0xff]
    %v131 = vld [vmem:[%s127 + $0x18] sm:$0xff]
    %v132 = vld [vmem:[%s127 + $0x20] sm:$0xff]
    %v133 = vld [vmem:[%s127 + $0x28] sm:$0xff]
    %v134 = vld [vmem:[%s127 + $0x30] sm:$0xff]
    %v135 = vld [vmem:[%s127 + $0x38] sm:$0xff]
    %v137 = vsel %vm49, %v126, 0
    %139 = vmatprep.subr.mxu0 0.0
    %140 = vmatpush1.msra.mxu0 %v128
    %141 = vmatprep.subr.mxu0 0.0
    %142 = vmatpush1.msra.mxu0 %v129
    %143 = vmatprep.subr.mxu0 0.0
    %144 = vmatpush1.msra.mxu0 %v130
    %145 = vmatprep.subr.mxu0 0.0
    %146 = vmatpush1.msra.mxu0 %v131
    %147 = vmatprep.subr.mxu0 0.0
    %148 = vmatpush1.msra.mxu0 %v132
    %149 = vmatprep.subr.mxu0 0.0
    %150 = vmatpush1.msra.mxu0 %v133
    %151 = vmatprep.subr.mxu0 0.0
    %152 = vmatpush1.msra.mxu0 %v134
    %153 = vmatprep.subr.mxu0 0.0
    %154 = vmatpush1.msra.mxu0 %v135
    %155 = vmatprep.subr.mxu0 0.0
    %156 = vmatpush1.msra.mxu0 0.0
    %157 = vmatprep.subr.mxu0 0.0
    %158 = vmatpush1.msra.mxu0 0.0
    %159 = vmatprep.subr.mxu0 0.0
    %160 = vmatpush1.msra.mxu0 0.0
    %161 = vmatprep.subr.mxu0 0.0
    %162 = vmatpush1.msra.mxu0 0.0
    %163 = vmatprep.subr.mxu0 0.0
    %164 = vmatpush1.msra.mxu0 0.0
    %165 = vmatprep.subr.mxu0 0.0
    %166 = vmatpush1.msra.mxu0 0.0
    %167 = vmatprep.subr.mxu0 0.0
    %168 = vmatpush1.msra.mxu0 0.0
    %169 = vmatprep.subr.mxu0 0.0
    %170 = vmatpush1.msra.mxu0 0.0
    %171 = vmatprep.subr.mxu0 0.0
    %172 = vmatpush1.msra.mxu0 0.0
    %173 = vmatprep.subr.mxu0 0.0
    %174 = vmatpush1.msra.mxu0 0.0
    %175 = vmatprep.subr.mxu0 0.0
    %176 = vmatpush1.msra.mxu0 0.0
    %177 = vmatprep.subr.mxu0 0.0
    %178 = vmatpush1.msra.mxu0 0.0
    %179 = vmatprep.subr.mxu0 0.0
    %180 = vmatpush1.msra.mxu0 0.0
    %181 = vmatprep.subr.mxu0 0.0
    %182 = vmatpush1.msra.mxu0 0.0
    %183 = vmatprep.subr.mxu0 0.0
    %184 = vmatpush1.msra.mxu0 0.0
    %185 = vmatprep.subr.mxu0 0.0
    %186 = vmatpush1.msra.mxu0 0.0
    %187 = vmatprep.subr.mxu0 0.0
    %188 = vmatpush1.msra.mxu0 0.0
    %189 = vmatprep.subr.mxu0 0.0
    %190 = vmatpush1.msra.mxu0 0.0
    %191 = vmatprep.subr.mxu0 0.0
    %192 = vmatpush1.msra.mxu0 0.0
    %193 = vmatprep.subr.mxu0 0.0
    %194 = vmatpush1.msra.mxu0 0.0
    %195 = vmatprep.subr.mxu0 0.0
    %196 = vmatpush1.msra.mxu0 0.0
    %197 = vmatprep.subr.mxu0 0.0
    %198 = vmatpush1.msra.mxu0 0.0
    %199 = vmatprep.subr.mxu0 0.0
    %200 = vmatpush1.msra.mxu0 0.0
    %201 = vmatprep.subr.mxu0 0.0
    %202 = vmatpush1.msra.mxu0 0.0
    %203 = vmatprep.mubr.f32.mxu0 0.0
    %204 = vmatmul.mubr.f32.gmra.mrb[0].mxu0 %v137
    %v205 = vpop.f32.mrb[0].mxu0
    %v206 = vadd.f32 0.0, %v205
    %v207 = vpop.f32.mrb[0].mxu0
    %208 = vdwg.mxu0
    %s209 = scalar_lea.vmem [#allocation7], 2
    %210 = vst.msk [vmem:[%s209] sm:$0x3] %vm123, %v206
    %s211 = scalar_lea.vmem [#allocation2], 4
    %v212 = vld [vmem:[%s211] sm:$0x3]
    %s213 = scalar_lea.vmem [#allocation5], 128
    %v214 = vld [vmem:[%s213] sm:$0xff]
    %v215 = vld [vmem:[%s213 + $0x8] sm:$0xff]
    %v216 = vld [vmem:[%s213 + $0x10] sm:$0xff]
    %v217 = vld [vmem:[%s213 + $0x18] sm:$0xff]
    %v218 = vld [vmem:[%s213 + $0x20] sm:$0xff]
    %v219 = vld [vmem:[%s213 + $0x28] sm:$0xff]
    %v220 = vld [vmem:[%s213 + $0x30] sm:$0xff]
    %v221 = vld [vmem:[%s213 + $0x38] sm:$0xff]
    %v223 = vsel %vm49, %v212, 0
    %225 = vmatprep.subr.mxu0 0.0
    %226 = vmatpush1.msra.mxu0 %v214
    %227 = vmatprep.subr.mxu0 0.0
    %228 = vmatpush1.msra.mxu0 %v215
    %229 = vmatprep.subr.mxu0 0.0
    %230 = vmatpush1.msra.mxu0 %v216
    %231 = vmatprep.subr.mxu0 0.0
    %232 = vmatpush1.msra.mxu0 %v217
    %233 = vmatprep.subr.mxu0 0.0
    %234 = vmatpush1.msra.mxu0 %v218
    %235 = vmatprep.subr.mxu0 0.0
    %236 = vmatpush1.msra.mxu0 %v219
    %237 = vmatprep.subr.mxu0 0.0
    %238 = vmatpush1.msra.mxu0 %v220
    %239 = vmatprep.subr.mxu0 0.0
    %240 = vmatpush1.msra.mxu0 %v221
    %241 = vmatprep.subr.mxu0 0.0
    %242 = vmatpush1.msra.mxu0 0.0
    %243 = vmatprep.subr.mxu0 0.0
    %244 = vmatpush1.msra.mxu0 0.0
    %245 = vmatprep.subr.mxu0 0.0
    %246 = vmatpush1.msra.mxu0 0.0
    %247 = vmatprep.subr.mxu0 0.0
    %248 = vmatpush1.msra.mxu0 0.0
    %249 = vmatprep.subr.mxu0 0.0
    %250 = vmatpush1.msra.mxu0 0.0
    %251 = vmatprep.subr.mxu0 0.0
    %252 = vmatpush1.msra.mxu0 0.0
    %253 = vmatprep.subr.mxu0 0.0
    %254 = vmatpush1.msra.mxu0 0.0
    %255 = vmatprep.subr.mxu0 0.0
    %256 = vmatpush1.msra.mxu0 0.0
    %257 = vmatprep.subr.mxu0 0.0
    %258 = vmatpush1.msra.mxu0 0.0
    %259 = vmatprep.subr.mxu0 0.0
    %260 = vmatpush1.msra.mxu0 0.0
    %261 = vmatprep.subr.mxu0 0.0
    %262 = vmatpush1.msra.mxu0 0.0
    %263 = vmatprep.subr.mxu0 0.0
    %264 = vmatpush1.msra.mxu0 0.0
    %265 = vmatprep.subr.mxu0 0.0
    %266 = vmatpush1.msra.mxu0 0.0
    %267 = vmatprep.subr.mxu0 0.0
    %268 = vmatpush1.msra.mxu0 0.0
    %269 = vmatprep.subr.mxu0 0.0
    %270 = vmatpush1.msra.mxu0 0.0
    %271 = vmatprep.subr.mxu0 0.0
    %272 = vmatpush1.msra.mxu0 0.0
    %273 = vmatprep.subr.mxu0 0.0
    %274 = vmatpush1.msra.mxu0 0.0
    %275 = vmatprep.subr.mxu0 0.0
    %276 = vmatpush1.msra.mxu0 0.0
    %277 = vmatprep.subr.mxu0 0.0
    %278 = vmatpush1.msra.mxu0 0.0
    %279 = vmatprep.subr.mxu0 0.0
    %280 = vmatpush1.msra.mxu0 0.0
    %281 = vmatprep.subr.mxu0 0.0
    %282 = vmatpush1.msra.mxu0 0.0
    %283 = vmatprep.subr.mxu0 0.0
    %284 = vmatpush1.msra.mxu0 0.0
    %285 = vmatprep.subr.mxu0 0.0
    %286 = vmatpush1.msra.mxu0 0.0
    %287 = vmatprep.subr.mxu0 0.0
    %288 = vmatpush1.msra.mxu0 0.0
    %289 = vmatprep.mubr.f32.mxu0 0.0
    %290 = vmatmul.mubr.f32.gmra.mrb[0].mxu0 %v223
    %v291 = vpop.f32.mrb[0].mxu0
    %v292 = vadd.f32 0.0, %v291
    %v293 = vpop.f32.mrb[0].mxu0
    %294 = vdwg.mxu0
    %s295 = scalar_lea.vmem [#allocation7], 4
    %296 = vst.msk [vmem:[%s295] sm:$0x3] %vm123, %v292
    %s297 = scalar_lea.vmem [#allocation2], 6
    %v298 = vld [vmem:[%s297] sm:$0x3]
    %s299 = scalar_lea.vmem [#allocation5], 192
    %v300 = vld [vmem:[%s299] sm:$0xff]
    %v301 = vld [vmem:[%s299 + $0x8] sm:$0xff]
    %v302 = vld [vmem:[%s299 + $0x10] sm:$0xff]
    %v303 = vld [vmem:[%s299 + $0x18] sm:$0xff]
    %v304 = vld [vmem:[%s299 + $0x20] sm:$0xff]
    %v305 = vld [vmem:[%s299 + $0x28] sm:$0xff]
    %v306 = vld [vmem:[%s299 + $0x30] sm:$0xff]
    %v307 = vld [vmem:[%s299 + $0x38] sm:$0xff]
    %v309 = vsel %vm49, %v298, 0
    %311 = vmatprep.subr.mxu0 0.0
    %312 = vmatpush1.msra.mxu0 %v300
    %313 = vmatprep.subr.mxu0 0.0
    %314 = vmatpush1.msra.mxu0 %v301
    %315 = vmatprep.subr.mxu0 0.0
    %316 = vmatpush1.msra.mxu0 %v302
    %317 = vmatprep.subr.mxu0 0.0
    %318 = vmatpush1.msra.mxu0 %v303
    %319 = vmatprep.subr.mxu0 0.0
    %320 = vmatpush1.msra.mxu0 %v304
    %321 = vmatprep.subr.mxu0 0.0
    %322 = vmatpush1.msra.mxu0 %v305
    %323 = vmatprep.subr.mxu0 0.0
    %324 = vmatpush1.msra.mxu0 %v306
    %325 = vmatprep.subr.mxu0 0.0
    %326 = vmatpush1.msra.mxu0 %v307
    %327 = vmatprep.subr.mxu0 0.0
    %328 = vmatpush1.msra.mxu0 0.0
    %329 = vmatprep.subr.mxu0 0.0
    %330 = vmatpush1.msra.mxu0 0.0
    %331 = vmatprep.subr.mxu0 0.0
    %332 = vmatpush1.msra.mxu0 0.0
    %333 = vmatprep.subr.mxu0 0.0
    %334 = vmatpush1.msra.mxu0 0.0
    %335 = vmatprep.subr.mxu0 0.0
    %336 = vmatpush1.msra.mxu0 0.0
    %337 = vmatprep.subr.mxu0 0.0
    %338 = vmatpush1.msra.mxu0 0.0
    %339 = vmatprep.subr.mxu0 0.0
    %340 = vmatpush1.msra.mxu0 0.0
    %341 = vmatprep.subr.mxu0 0.0
    %342 = vmatpush1.msra.mxu0 0.0
    %343 = vmatprep.subr.mxu0 0.0
    %344 = vmatpush1.msra.mxu0 0.0
    %345 = vmatprep.subr.mxu0 0.0
    %346 = vmatpush1.msra.mxu0 0.0
    %347 = vmatprep.subr.mxu0 0.0
    %348 = vmatpush1.msra.mxu0 0.0
    %349 = vmatprep.subr.mxu0 0.0
    %350 = vmatpush1.msra.mxu0 0.0
    %351 = vmatprep.subr.mxu0 0.0
    %352 = vmatpush1.msra.mxu0 0.0
    %353 = vmatprep.subr.mxu0 0.0
    %354 = vmatpush1.msra.mxu0 0.0
    %355 = vmatprep.subr.mxu0 0.0
    %356 = vmatpush1.msra.mxu0 0.0
    %357 = vmatprep.subr.mxu0 0.0
    %358 = vmatpush1.msra.mxu0 0.0
    %359 = vmatprep.subr.mxu0 0.0
    %360 = vmatpush1.msra.mxu0 0.0
    %361 = vmatprep.subr.mxu0 0.0
    %362 = vmatpush1.msra.mxu0 0.0
    %363 = vmatprep.subr.mxu0 0.0
    %364 = vmatpush1.msra.mxu0 0.0
    %365 = vmatprep.subr.mxu0 0.0
    %366 = vmatpush1.msra.mxu0 0.0
    %367 = vmatprep.subr.mxu0 0.0
    %368 = vmatpush1.msra.mxu0 0.0
    %369 = vmatprep.subr.mxu0 0.0
    %370 = vmatpush1.msra.mxu0 0.0
    %371 = vmatprep.subr.mxu0 0.0
    %372 = vmatpush1.msra.mxu0 0.0
    %373 = vmatprep.subr.mxu0 0.0
    %374 = vmatpush1.msra.mxu0 0.0
    %375 = vmatprep.mubr.f32.mxu0 0.0
    %376 = vmatmul.mubr.f32.gmra.mrb[0].mxu0 %v309
    %v377 = vpop.f32.mrb[0].mxu0
    %v378 = vadd.f32 0.0, %v377
    %v379 = vpop.f32.mrb[0].mxu0
    %380 = vdwg.mxu0
    %s381 = scalar_lea.vmem [#allocation7], 6
    %382 = vst.msk [vmem:[%s381] sm:$0x3] %vm123, %v378
    %s383 = scalar_lea.vmem [#allocation2], 8
    %v384 = vld [vmem:[%s383] sm:$0x3]
    %s385 = scalar_lea.vmem [#allocation5], 256
    %v386 = vld [vmem:[%s385] sm:$0xff]
    %v387 = vld [vmem:[%s385 + $0x8] sm:$0xff]
    %v388 = vld [vmem:[%s385 + $0x10] sm:$0xff]
    %v389 = vld [vmem:[%s385 + $0x18] sm:$0xff]
    %v390 = vld [vmem:[%s385 + $0x20] sm:$0xff]
    %v391 = vld [vmem:[%s385 + $0x28] sm:$0xff]
    %v392 = vld [vmem:[%s385 + $0x30] sm:$0xff]
    %v393 = vld [vmem:[%s385 + $0x38] sm:$0xff]
    %v395 = vsel %vm49, %v384, 0
    %397 = vmatprep.subr.mxu0 0.0
    %398 = vmatpush1.msra.mxu0 %v386
    %399 = vmatprep.subr.mxu0 0.0
    %400 = vmatpush1.msra.mxu0 %v387
    %401 = vmatprep.subr.mxu0 0.0
    %402 = vmatpush1.msra.mxu0 %v388
    %403 = vmatprep.subr.mxu0 0.0
    %404 = vmatpush1.msra.mxu0 %v389
    %405 = vmatprep.subr.mxu0 0.0
    %406 = vmatpush1.msra.mxu0 %v390
    %407 = vmatprep.subr.mxu0 0.0
    %408 = vmatpush1.msra.mxu0 %v391
    %409 = vmatprep.subr.mxu0 0.0
    %410 = vmatpush1.msra.mxu0 %v392
    %411 = vmatprep.subr.mxu0 0.0
    %412 = vmatpush1.msra.mxu0 %v393
    %413 = vmatprep.subr.mxu0 0.0
    %414 = vmatpush1.msra.mxu0 0.0
    %415 = vmatprep.subr.mxu0 0.0
    %416 = vmatpush1.msra.mxu0 0.0
    %417 = vmatprep.subr.mxu0 0.0
    %418 = vmatpush1.msra.mxu0 0.0
    %419 = vmatprep.subr.mxu0 0.0
    %420 = vmatpush1.msra.mxu0 0.0
    %421 = vmatprep.subr.mxu0 0.0
    %422 = vmatpush1.msra.mxu0 0.0
    %423 = vmatprep.subr.mxu0 0.0
    %424 = vmatpush1.msra.mxu0 0.0
    %425 = vmatprep.subr.mxu0 0.0
    %426 = vmatpush1.msra.mxu0 0.0
    %427 = vmatprep.subr.mxu0 0.0
    %428 = vmatpush1.msra.mxu0 0.0
    %429 = vmatprep.subr.mxu0 0.0
    %430 = vmatpush1.msra.mxu0 0.0
    %431 = vmatprep.subr.mxu0 0.0
    %432 = vmatpush1.msra.mxu0 0.0
    %433 = vmatprep.subr.mxu0 0.0
    %434 = vmatpush1.msra.mxu0 0.0
    %435 = vmatprep.subr.mxu0 0.0
    %436 = vmatpush1.msra.mxu0 0.0
    %437 = vmatprep.subr.mxu0 0.0
    %438 = vmatpush1.msra.mxu0 0.0
    %439 = vmatprep.subr.mxu0 0.0
    %440 = vmatpush1.msra.mxu0 0.0
    %441 = vmatprep.subr.mxu0 0.0
    %442 = vmatpush1.msra.mxu0 0.0
    %443 = vmatprep.subr.mxu0 0.0
    %444 = vmatpush1.msra.mxu0 0.0
    %445 = vmatprep.subr.mxu0 0.0
    %446 = vmatpush1.msra.mxu0 0.0
    %447 = vmatprep.subr.mxu0 0.0
    %448 = vmatpush1.msra.mxu0 0.0
    %449 = vmatprep.subr.mxu0 0.0
    %450 = vmatpush1.msra.mxu0 0.0
    %451 = vmatprep.subr.mxu0 0.0
    %452 = vmatpush1.msra.mxu0 0.0
    %453 = vmatprep.subr.mxu0 0.0
    %454 = vmatpush1.msra.mxu0 0.0
    %455 = vmatprep.subr.mxu0 0.0
    %456 = vmatpush1.msra.mxu0 0.0
    %457 = vmatprep.subr.mxu0 0.0
    %458 = vmatpush1.msra.mxu0 0.0
    %459 = vmatprep.subr.mxu0 0.0
    %460 = vmatpush1.msra.mxu0 0.0
    %461 = vmatprep.mubr.f32.mxu0 0.0
    %462 = vmatmul.mubr.f32.gmra.mrb[0].mxu0 %v395
    %v463 = vpop.f32.mrb[0].mxu0
    %v464 = vadd.f32 0.0, %v463
    %v465 = vpop.f32.mrb[0].mxu0
    %466 = vdwg.mxu0
    %s467 = scalar_lea.vmem [#allocation7], 8
    %468 = vst.msk [vmem:[%s467] sm:$0x3] %vm123, %v464
    %s469 = scalar_lea.vmem [#allocation2], 10
    %v470 = vld [vmem:[%s469] sm:$0x3]
    %s471 = scalar_lea.vmem [#allocation5], 320
    %v472 = vld [vmem:[%s471] sm:$0xff]
    %v473 = vld [vmem:[%s471 + $0x8] sm:$0xff]
    %v474 = vld [vmem:[%s471 + $0x10] sm:$0xff]
    %v475 = vld [vmem:[%s471 + $0x18] sm:$0xff]
    %v476 = vld [vmem:[%s471 + $0x20] sm:$0xff]
    %v477 = vld [vmem:[%s471 + $0x28] sm:$0xff]
    %v478 = vld [vmem:[%s471 + $0x30] sm:$0xff]
    %v479 = vld [vmem:[%s471 + $0x38] sm:$0xff]
    %v481 = vsel %vm49, %v470, 0
    %483 = vmatprep.subr.mxu0 0.0
    %484 = vmatpush1.msra.mxu0 %v472
    %485 = vmatprep.subr.mxu0 0.0
    %486 = vmatpush1.msra.mxu0 %v473
    %487 = vmatprep.subr.mxu0 0.0
    %488 = vmatpush1.msra.mxu0 %v474
    %489 = vmatprep.subr.mxu0 0.0
    %490 = vmatpush1.msra.mxu0 %v475
    %491 = vmatprep.subr.mxu0 0.0
    %492 = vmatpush1.msra.mxu0 %v476
    %493 = vmatprep.subr.mxu0 0.0
    %494 = vmatpush1.msra.mxu0 %v477
    %495 = vmatprep.subr.mxu0 0.0
    %496 = vmatpush1.msra.mxu0 %v478
    %497 = vmatprep.subr.mxu0 0.0
    %498 = vmatpush1.msra.mxu0 %v479
    %499 = vmatprep.subr.mxu0 0.0
    %500 = vmatpush1.msra.mxu0 0.0
    %501 = vmatprep.subr.mxu0 0.0
    %502 = vmatpush1.msra.mxu0 0.0
    %503 = vmatprep.subr.mxu0 0.0
    %504 = vmatpush1.msra.mxu0 0.0
    %505 = vmatprep.subr.mxu0 0.0
    %506 = vmatpush1.msra.mxu0 0.0
    %507 = vmatprep.subr.mxu0 0.0
    %508 = vmatpush1.msra.mxu0 0.0
    %509 = vmatprep.subr.mxu0 0.0
    %510 = vmatpush1.msra.mxu0 0.0
    %511 = vmatprep.subr.mxu0 0.0
    %512 = vmatpush1.msra.mxu0 0.0
    %513 = vmatprep.subr.mxu0 0.0
    %514 = vmatpush1.msra.mxu0 0.0
    %515 = vmatprep.subr.mxu0 0.0
    %516 = vmatpush1.msra.mxu0 0.0
    %517 = vmatprep.subr.mxu0 0.0
    %518 = vmatpush1.msra.mxu0 0.0
    %519 = vmatprep.subr.mxu0 0.0
    %520 = vmatpush1.msra.mxu0 0.0
    %521 = vmatprep.subr.mxu0 0.0
    %522 = vmatpush1.msra.mxu0 0.0
    %523 = vmatprep.subr.mxu0 0.0
    %524 = vmatpush1.msra.mxu0 0.0
    %525 = vmatprep.subr.mxu0 0.0
    %526 = vmatpush1.msra.mxu0 0.0
    %527 = vmatprep.subr.mxu0 0.0
    %528 = vmatpush1.msra.mxu0 0.0
    %529 = vmatprep.subr.mxu0 0.0
    %530 = vmatpush1.msra.mxu0 0.0
    %531 = vmatprep.subr.mxu0 0.0
    %532 = vmatpush1.msra.mxu0 0.0
    %533 = vmatprep.subr.mxu0 0.0
    %534 = vmatpush1.msra.mxu0 0.0
    %535 = vmatprep.subr.mxu0 0.0
    %536 = vmatpush1.msra.mxu0 0.0
    %537 = vmatprep.subr.mxu0 0.0
    %538 = vmatpush1.msra.mxu0 0.0
    %539 = vmatprep.subr.mxu0 0.0
    %540 = vmatpush1.msra.mxu0 0.0
    %541 = vmatprep.subr.mxu0 0.0
    %542 = vmatpush1.msra.mxu0 0.0
    %543 = vmatprep.subr.mxu0 0.0
    %544 = vmatpush1.msra.mxu0 0.0
    %545 = vmatprep.subr.mxu0 0.0
    %546 = vmatpush1.msra.mxu0 0.0
    %547 = vmatprep.mubr.f32.mxu0 0.0
    %548 = vmatmul.mubr.f32.gmra.mrb[0].mxu0 %v481
    %v549 = vpop.f32.mrb[0].mxu0
    %v550 = vadd.f32 0.0, %v549
    %v551 = vpop.f32.mrb[0].mxu0
    %552 = vdwg.mxu0
    %s553 = scalar_lea.vmem [#allocation7], 10
    %554 = vst.msk [vmem:[%s553] sm:$0x3] %vm123, %v550
    %s555 = scalar_lea.vmem [#allocation2], 12
    %v556 = vld [vmem:[%s555] sm:$0x3]
    %s557 = scalar_lea.vmem [#allocation5], 384
    %v558 = vld [vmem:[%s557] sm:$0xff]
    %v559 = vld [vmem:[%s557 + $0x8] sm:$0xff]
    %v560 = vld [vmem:[%s557 + $0x10] sm:$0xff]
    %v561 = vld [vmem:[%s557 + $0x18] sm:$0xff]
    %v562 = vld [vmem:[%s557 + $0x20] sm:$0xff]
    %v563 = vld [vmem:[%s557 + $0x28] sm:$0xff]
    %v564 = vld [vmem:[%s557 + $0x30] sm:$0xff]
    %v565 = vld [vmem:[%s557 + $0x38] sm:$0xff]
    %v567 = vsel %vm49, %v556, 0
    %569 = vmatprep.subr.mxu0 0.0
    %570 = vmatpush1.msra.mxu0 %v558
    %571 = vmatprep.subr.mxu0 0.0
    %572 = vmatpush1.msra.mxu0 %v559
    %573 = vmatprep.subr.mxu0 0.0
    %574 = vmatpush1.msra.mxu0 %v560
    %575 = vmatprep.subr.mxu0 0.0
    %576 = vmatpush1.msra.mxu0 %v561
    %577 = vmatprep.subr.mxu0 0.0
    %578 = vmatpush1.msra.mxu0 %v562
    %579 = vmatprep.subr.mxu0 0.0
    %580 = vmatpush1.msra.mxu0 %v563
    %581 = vmatprep.subr.mxu0 0.0
    %582 = vmatpush1.msra.mxu0 %v564
    %583 = vmatprep.subr.mxu0 0.0
    %584 = vmatpush1.msra.mxu0 %v565
    %585 = vmatprep.subr.mxu0 0.0
    %586 = vmatpush1.msra.mxu0 0.0
    %587 = vmatprep.subr.mxu0 0.0
    %588 = vmatpush1.msra.mxu0 0.0
    %589 = vmatprep.subr.mxu0 0.0
    %590 = vmatpush1.msra.mxu0 0.0
    %591 = vmatprep.subr.mxu0 0.0
    %592 = vmatpush1.msra.mxu0 0.0
    %593 = vmatprep.subr.mxu0 0.0
    %594 = vmatpush1.msra.mxu0 0.0
    %595 = vmatprep.subr.mxu0 0.0
    %596 = vmatpush1.msra.mxu0 0.0
    %597 = vmatprep.subr.mxu0 0.0
    %598 = vmatpush1.msra.mxu0 0.0
    %599 = vmatprep.subr.mxu0 0.0
    %600 = vmatpush1.msra.mxu0 0.0
    %601 = vmatprep.subr.mxu0 0.0
    %602 = vmatpush1.msra.mxu0 0.0
    %603 = vmatprep.subr.mxu0 0.0
    %604 = vmatpush1.msra.mxu0 0.0
    %605 = vmatprep.subr.mxu0 0.0
    %606 = vmatpush1.msra.mxu0 0.0
    %607 = vmatprep.subr.mxu0 0.0
    %608 = vmatpush1.msra.mxu0 0.0
    %609 = vmatprep.subr.mxu0 0.0
    %610 = vmatpush1.msra.mxu0 0.0
    %611 = vmatprep.subr.mxu0 0.0
    %612 = vmatpush1.msra.mxu0 0.0
    %613 = vmatprep.subr.mxu0 0.0
    %614 = vmatpush1.msra.mxu0 0.0
    %615 = vmatprep.subr.mxu0 0.0
    %616 = vmatpush1.msra.mxu0 0.0
    %617 = vmatprep.subr.mxu0 0.0
    %618 = vmatpush1.msra.mxu0 0.0
    %619 = vmatprep.subr.mxu0 0.0
    %620 = vmatpush1.msra.mxu0 0.0
    %621 = vmatprep.subr.mxu0 0.0
    %622 = vmatpush1.msra.mxu0 0.0
    %623 = vmatprep.subr.mxu0 0.0
    %624 = vmatpush1.msra.mxu0 0.0
    %625 = vmatprep.subr.mxu0 0.0
    %626 = vmatpush1.msra.mxu0 0.0
    %627 = vmatprep.subr.mxu0 0.0
    %628 = vmatpush1.msra.mxu0 0.0
    %629 = vmatprep.subr.mxu0 0.0
    %630 = vmatpush1.msra.mxu0 0.0
    %631 = vmatprep.subr.mxu0 0.0
    %632 = vmatpush1.msra.mxu0 0.0
    %633 = vmatprep.mubr.f32.mxu0 0.0
    %634 = vmatmul.mubr.f32.gmra.mrb[0].mxu0 %v567
    %v635 = vpop.f32.mrb[0].mxu0
    %v636 = vadd.f32 0.0, %v635
    %v637 = vpop.f32.mrb[0].mxu0
    %638 = vdwg.mxu0
    %s639 = scalar_lea.vmem [#allocation7], 12
    %640 = vst.msk [vmem:[%s639] sm:$0x3] %vm123, %v636
    %s641 = scalar_lea.vmem [#allocation2], 14
    %v642 = vld [vmem:[%s641] sm:$0x3]
    %s643 = scalar_lea.vmem [#allocation5], 448
    %v644 = vld [vmem:[%s643] sm:$0xff]
    %v645 = vld [vmem:[%s643 + $0x8] sm:$0xff]
    %v646 = vld [vmem:[%s643 + $0x10] sm:$0xff]
    %v647 = vld [vmem:[%s643 + $0x18] sm:$0xff]
    %v648 = vld [vmem:[%s643 + $0x20] sm:$0xff]
    %v649 = vld [vmem:[%s643 + $0x28] sm:$0xff]
    %v650 = vld [vmem:[%s643 + $0x30] sm:$0xff]
    %v651 = vld [vmem:[%s643 + $0x38] sm:$0xff]
    %v653 = vsel %vm49, %v642, 0
    %655 = vmatprep.subr.mxu0 0.0
    %656 = vmatpush1.msra.mxu0 %v644
    %657 = vmatprep.subr.mxu0 0.0
    %658 = vmatpush1.msra.mxu0 %v645
    %659 = vmatprep.subr.mxu0 0.0
    %660 = vmatpush1.msra.mxu0 %v646
    %661 = vmatprep.subr.mxu0 0.0
    %662 = vmatpush1.msra.mxu0 %v647
    %663 = vmatprep.subr.mxu0 0.0
    %664 = vmatpush1.msra.mxu0 %v648
    %665 = vmatprep.subr.mxu0 0.0
    %666 = vmatpush1.msra.mxu0 %v649
    %667 = vmatprep.subr.mxu0 0.0
    %668 = vmatpush1.msra.mxu0 %v650
    %669 = vmatprep.subr.mxu0 0.0
    %670 = vmatpush1.msra.mxu0 %v651
    %671 = vmatprep.subr.mxu0 0.0
    %672 = vmatpush1.msra.mxu0 0.0
    %673 = vmatprep.subr.mxu0 0.0
    %674 = vmatpush1.msra.mxu0 0.0
    %675 = vmatprep.subr.mxu0 0.0
    %676 = vmatpush1.msra.mxu0 0.0
    %677 = vmatprep.subr.mxu0 0.0
    %678 = vmatpush1.msra.mxu0 0.0
    %679 = vmatprep.subr.mxu0 0.0
    %680 = vmatpush1.msra.mxu0 0.0
    %681 = vmatprep.subr.mxu0 0.0
    %682 = vmatpush1.msra.mxu0 0.0
    %683 = vmatprep.subr.mxu0 0.0
    %684 = vmatpush1.msra.mxu0 0.0
    %685 = vmatprep.subr.mxu0 0.0
    %686 = vmatpush1.msra.mxu0 0.0
    %687 = vmatprep.subr.mxu0 0.0
    %688 = vmatpush1.msra.mxu0 0.0
    %689 = vmatprep.subr.mxu0 0.0
    %690 = vmatpush1.msra.mxu0 0.0
    %691 = vmatprep.subr.mxu0 0.0
    %692 = vmatpush1.msra.mxu0 0.0
    %693 = vmatprep.subr.mxu0 0.0
    %694 = vmatpush1.msra.mxu0 0.0
    %695 = vmatprep.subr.mxu0 0.0
    %696 = vmatpush1.msra.mxu0 0.0
    %697 = vmatprep.subr.mxu0 0.0
    %698 = vmatpush1.msra.mxu0 0.0
    %699 = vmatprep.subr.mxu0 0.0
    %700 = vmatpush1.msra.mxu0 0.0
    %701 = vmatprep.subr.mxu0 0.0
    %702 = vmatpush1.msra.mxu0 0.0
    %703 = vmatprep.subr.mxu0 0.0
    %704 = vmatpush1.msra.mxu0 0.0
    %705 = vmatprep.subr.mxu0 0.0
    %706 = vmatpush1.msra.mxu0 0.0
    %707 = vmatprep.subr.mxu0 0.0
    %708 = vmatpush1.msra.mxu0 0.0
    %709 = vmatprep.subr.mxu0 0.0
    %710 = vmatpush1.msra.mxu0 0.0
    %711 = vmatprep.subr.mxu0 0.0
    %712 = vmatpush1.msra.mxu0 0.0
    %713 = vmatprep.subr.mxu0 0.0
    %714 = vmatpush1.msra.mxu0 0.0
    %715 = vmatprep.subr.mxu0 0.0
    %716 = vmatpush1.msra.mxu0 0.0
    %717 = vmatprep.subr.mxu0 0.0
    %718 = vmatpush1.msra.mxu0 0.0
    %719 = vmatprep.mubr.f32.mxu0 0.0
    %720 = vmatmul.mubr.f32.gmra.mrb[0].mxu0 %v653
    %v721 = vpop.f32.mrb[0].mxu0
    %v722 = vadd.f32 0.0, %v721
    %v723 = vpop.f32.mrb[0].mxu0
    %724 = vdwg.mxu0
    %s725 = scalar_lea.vmem [#allocation7], 14
    %726 = vst.msk [vmem:[%s725] sm:$0x3] %vm123, %v722
    // Predicated region
    $region18: #{controlled_ode_forward.1} parent=1 // pred_check
      _
    $region19: #{controlled_ode_forward.1} parent=1 // pred_check_branch
      %728 = sbr.rel (0) target = $region21
    $region20: #{controlled_ode_forward.1} parent=1 // pred_region
      %s730 = ssub.s32 256, 256
      %731 = vsyncadd [#allocation4], %s730
      %s732 = sshll.u32 [#allocation7], 4
      %s733 = int_to_ptr.vmem [resolvable:$true] %s732
      %738 = dma.vmem_to_hbm [thread:$0]  %s733, 256, %s2, [#allocation4], 32, 32, 2
    $region21: #{controlled_ode_forward.1} parent=1 // pred_fallthru
      _
    // Predicated region
    $region22: #{controlled_ode_forward.1} parent=1 // pred_check
      _
    $region23: #{controlled_ode_forward.1} parent=1 // pred_check_branch
      %740 = sbr.rel (0) target = $region25
    $region24: #{controlled_ode_forward.1} parent=1 // pred_region
      %741 = dma.done [#allocation4], 256
    $region25: #{controlled_ode_forward.1} parent=1 // pred_fallthru
      _
    %742 = vsyncpa [#allocation3], 1
    %743 = vsyncpa [#allocation6], 1
    %744 = vsyncpa [#allocation4], 1

</llo_original>
